<compile_context>
chip_gen: v7x
topology: tpu7x:2x2x1
jax: 0.10.0
libtpu: 0.0.40
codegen_flags: <defaults>
</compile_context>

<pallas_src>
import jax
import jax.numpy as jnp
from jax.experimental import pallas as pl
from jax.experimental.pallas import tpu as pltpu

NEG_SLOPE = 0.01  # PyTorch nn.LeakyReLU() default


def _round_up(v, m):
    return (v + m - 1) // m * m


def _content_fc_kernel(flags_ref, x_ref, wt_ref, b_ref, m_ref, o_ref):
    # flags_ref: (n_tiles,) int32 in SMEM -- 1 iff this row tile contains any kept row
    # x_ref:  (tm, h_in_p)       bf16 tile of flattened input rows
    # wt_ref: (h_in_p, h_out_p)  bf16 full (pre-transposed, zero-padded) weight, resident
    # b_ref:  (1, h_out_p)       f32 bias
    # m_ref:  (tm, 1)            f32 0/1 row-keep mask
    # o_ref:  (tm, h_out_p)      f32 output tile
    i = pl.program_id(0)

    @pl.when(flags_ref[i] != 0)
    def _compute():
        y = jnp.dot(x_ref[...], wt_ref[...], preferred_element_type=jnp.float32)
        y = y + b_ref[...]
        y = jnp.where(y >= 0, y, NEG_SLOPE * y)              # fc LeakyReLU
        o_ref[...] = (y * m_ref[...]).astype(o_ref.dtype)    # y - mask_matrix.detach()

    @pl.when(flags_ref[i] == 0)
    def _skip():
        # All rows in this tile are masked out -> result is exactly zero; skip MXU work
        # (and, via the flag-driven index_map, the x-tile DMA was skipped too).
        o_ref[...] = jnp.zeros_like(o_ref)


def content_reconstruction_fc(x, mask_nonzero, W, b, *, tm=256):
    """x: (B, S, h_in) f32; mask_nonzero: (batch_idx, row_idx) int arrays of rows to KEEP;
    W: (h_out, h_in); b: (h_out,). Returns (B, S, h_out) f32."""
    B, S, h_in = x.shape
    h_out = W.shape[0]
    M = B * S

    # Padded / tiled sizes: lane-dense output (multiple of 128), lane-aligned K,
    # sublane-aligned row tile.
    h_in_p = _round_up(h_in, 128)
    h_out_p = _round_up(h_out, 128)
    tm_eff = min(tm, _round_up(M, 8))
    M_pad = _round_up(M, tm_eff)
    n_tiles = M_pad // tm_eff

    bidx, ridx = mask_nonzero
    flat_rows = bidx.astype(jnp.int32) * S + ridx.astype(jnp.int32)

    # Dense 0/1 row-keep mask plus a per-tile "has any kept row" flag (scalar prefetch).
    row_mask = jnp.zeros((M_pad,), jnp.float32).at[flat_rows].set(1.0)
    m_flat = row_mask.reshape(M_pad, 1)
    flags = jnp.zeros((n_tiles,), jnp.int32).at[flat_rows // tm_eff].set(1)

    # bf16 matmul inputs (f32 accumulation in-kernel); bias/mask/epilogue stay f32.
    x_flat = jnp.pad(
        x.reshape(M, h_in).astype(jnp.float32),
        ((0, M_pad - M), (0, h_in_p - h_in)),
    ).astype(jnp.bfloat16)
    wt = jnp.pad(
        W.T.astype(jnp.float32),
        ((0, h_in_p - h_in), (0, h_out_p - h_out)),
    ).astype(jnp.bfloat16)
    b2 = jnp.pad(b.astype(jnp.float32), (0, h_out_p - h_out)).reshape(1, h_out_p)

    # VMEM budget estimate (double-buffered tiles + resident weight); cap for v7x's 64 MiB.
    est_bytes = 2 * (
        tm_eff * h_in_p * 2        # x tile (bf16)
        + h_in_p * h_out_p * 2     # weight (bf16)
        + h_out_p * 4              # bias
        + tm_eff * 4               # mask column
        + tm_eff * h_out_p * 4     # output tile
    )
    vmem_limit = int(min(max(2 * est_bytes, 32 * 1024 * 1024), 64 * 1024 * 1024))

    cost = pl.CostEstimate(
        flops=2 * M_pad * h_in_p * h_out_p,
        transcendentals=0,
        bytes_accessed=(
            x_flat.size * 2 + wt.size * 2 + b2.size * 4
            + m_flat.size * 4 + M_pad * h_out_p * 4
        ),
    )

    # Flag-driven index_maps: when a tile is fully masked we point its x / mask block at
    # block 0 (never read in the skip branch), so the pipeline does not stream the real
    # tile from HBM. Weight/bias index_maps are constant -> fetched once, stay resident.
    def x_map(i, flg):
        return (flg[i] * i, 0)

    def m_map(i, flg):
        return (flg[i] * i, 0)

    out_flat = pl.pallas_call(
        _content_fc_kernel,
        out_shape=jax.ShapeDtypeStruct((M_pad, h_out_p), jnp.float32),
        grid_spec=pltpu.PrefetchScalarGridSpec(
            num_scalar_prefetch=1,
            grid=(n_tiles,),
            in_specs=[
                pl.BlockSpec((tm_eff, h_in_p), x_map),
                # Full weight resident; constant index_map -> fetched once.
                # NOTE: for very large h_in/h_out (v7x: 64 MiB VMEM) switch to a K-tiled
                # grid axis with an f32 VMEM accumulator instead of holding W resident.
                pl.BlockSpec((h_in_p, h_out_p), lambda i, _f: (0, 0)),
                pl.BlockSpec((1, h_out_p), lambda i, _f: (0, 0)),
                pl.BlockSpec((tm_eff, 1), m_map),
            ],
            out_specs=pl.BlockSpec((tm_eff, h_out_p), lambda i, _f: (i, 0)),
        ),
        compiler_params=pltpu.CompilerParams(
            dimension_semantics=("parallel",),
            vmem_limit_bytes=vmem_limit,
        ),
        cost_estimate=cost,
    )(flags, x_flat, wt, b2, m_flat)

    # Slice off the row / lane padding and restore (B, S, h_out).
    return out_flat[:M, :h_out].reshape(B, S, h_out)


def _reference_forward(x, mask_nonzero, W, b):
    y = jnp.einsum("bsi,oi->bso", x, W) + b
    y = jnp.where(y >= 0, y, NEG_SLOPE * y)                  # fc LeakyReLU
    bidx, ridx = mask_nonzero
    m = jnp.zeros(x.shape[:2], jnp.float32).at[bidx, ridx].set(1.0)
    return y * m[..., None]                                   # y - mask_matrix.detach()


if __name__ == "__main__":
    key = jax.random.PRNGKey(0)
    B, S, h_in, h_out = 2, 8, 32, 64

    k_x, k_w, k_b = jax.random.split(key, 3)
    x = jax.random.normal(k_x, (B, S, h_in), jnp.float32)
    # Deterministic parameter init (synthetic; matches nn.Linear(h_in, h_out) shapes).
    bound = 1.0 / (h_in ** 0.5)
    W = jax.random.uniform(k_w, (h_out, h_in), jnp.float32, -bound, bound)
    b = jax.random.uniform(k_b, (h_out,), jnp.float32, -bound, bound)

    # mask_nonzero = (batch indices, row indices) of rows to KEEP.
    batch_idx = jnp.array([0, 0, 0, 1, 1], dtype=jnp.int32)
    row_idx = jnp.array([0, 2, 5, 1, 7], dtype=jnp.int32)
    mask_nonzero = (batch_idx, row_idx)

    fwd = jax.jit(content_reconstruction_fc)
    out = jax.block_until_ready(fwd(x, mask_nonzero, W, b))

    ref = _reference_forward(x, mask_nonzero, W, b)
    assert out.shape == (B, S, h_out)
    # bf16 matmul inputs with f32 accumulation -> compare to f32 reference with wide tolerance.
    assert jnp.allclose(out, ref, atol=2e-2, rtol=2e-2), float(jnp.abs(out - ref).max())

    print("KERNEL_OK")
</pallas_src>

<mosaic_0001>
module attributes {stable_mosaic.version = 11 : i64} {
  func.func @_content_fc_kernel(%arg0: i32, %arg1: memref<1xi32, #tpu.memory_space<smem>>, %arg2: memref<16x128xbf16, #tpu.memory_space<vmem>>, %arg3: memref<128x128xbf16, #tpu.memory_space<vmem>>, %arg4: memref<1x128xf32, #tpu.memory_space<vmem>>, %arg5: memref<16x1xf32, #tpu.memory_space<vmem>>, %arg6: memref<16x128xf32, #tpu.memory_space<vmem>>) attributes {dimension_semantics = [#tpu.dimension_semantics<parallel>], iteration_bounds = array<i64: 1>, scalar_prefetch = 1 : i64, scratch_operands = 0 : i64, tpu.core_type = #tpu.core_type<tc>, window_params = [{transform_indices = @transform_0, window_bounds = array<i64: 16, 128>}, {pipeline_mode = #tpu.pipeline_mode<synchronous>, transform_indices = @transform_1, window_bounds = array<i64: 128, 128>}, {pipeline_mode = #tpu.pipeline_mode<synchronous>, transform_indices = @transform_2, window_bounds = array<i64: 1, 128>}, {transform_indices = @transform_3, window_bounds = array<i64: 16, 1>}, {transform_indices = @transform_4, window_bounds = array<i64: 16, 128>}]} {
    %0 = arith.index_cast %arg0 : i32 to index
    %1 = memref.load %arg1[%0] : memref<1xi32, #tpu.memory_space<smem>>
    %c0_i32 = arith.constant 0 : i32
    %2 = arith.cmpi ne, %1, %c0_i32 : i32
    %3 = arith.extui %2 : i1 to i32
    %c0_i32_0 = arith.constant 0 : i32
    %4 = arith.cmpi ne, %3, %c0_i32_0 : i32
    scf.if %4 {
      %c0 = arith.constant 0 : index
      %c0_3 = arith.constant 0 : index
      %10 = vector.load %arg2[%c0, %c0_3] : memref<16x128xbf16, #tpu.memory_space<vmem>>, vector<16x128xbf16>
      %c0_4 = arith.constant 0 : index
      %c0_5 = arith.constant 0 : index
      %11 = vector.load %arg3[%c0_4, %c0_5] : memref<128x128xbf16, #tpu.memory_space<vmem>>, vector<128x128xbf16>
      %cst = arith.constant dense<0.000000e+00> : vector<16x128xf32>
      %12 = tpu.matmul %10, %11, %cst {dimension_numbers = #tpu.dot_dimension_numbers<[1], [0], [0], [1], [0, 0, 1, 1], [], []>} : vector<16x128xbf16>, vector<128x128xbf16>, vector<16x128xf32> -> vector<16x128xf32>
      %c0_6 = arith.constant 0 : index
      %c0_7 = arith.constant 0 : index
      %13 = vector.load %arg4[%c0_6, %c0_7] : memref<1x128xf32, #tpu.memory_space<vmem>>, vector<1x128xf32>
      %14 = vector.broadcast %13 : vector<1x128xf32> to vector<16x128xf32>
      %15 = arith.addf %12, %14 : vector<16x128xf32>
      %cst_8 = arith.constant 0.000000e+00 : f32
      %16 = vector.broadcast %cst_8 : f32 to vector<16x128xf32>
      %17 = arith.cmpf oge, %15, %16 : vector<16x128xf32>
      %cst_9 = arith.constant 0.00999999977 : f32
      %18 = vector.broadcast %cst_9 : f32 to vector<16x128xf32>
      %19 = arith.mulf %18, %15 : vector<16x128xf32>
      %20 = arith.select %17, %15, %19 : vector<16x128xi1>, vector<16x128xf32>
      %c0_10 = arith.constant 0 : index
      %c0_11 = arith.constant 0 : index
      %21 = vector.load %arg5[%c0_10, %c0_11] : memref<16x1xf32, #tpu.memory_space<vmem>>, vector<16x1xf32>
      %22 = vector.broadcast %21 : vector<16x1xf32> to vector<16x128xf32>
      %23 = arith.mulf %20, %22 : vector<16x128xf32>
      %c0_12 = arith.constant 0 : index
      %c0_13 = arith.constant 0 : index
      %24 = vector.load %arg6[%c0_12, %c0_13] : memref<16x128xf32, #tpu.memory_space<vmem>>, vector<16x128xf32>
      tpu.vector_store %arg6[%c0_12, %c0_13], %23 {strides = array<i32>} : memref<16x128xf32, #tpu.memory_space<vmem>>, vector<16x128xf32>,
    } else {
    }
    %5 = arith.index_cast %arg0 : i32 to index
    %6 = memref.load %arg1[%5] : memref<1xi32, #tpu.memory_space<smem>>
    %c0_i32_1 = arith.constant 0 : i32
    %7 = arith.cmpi eq, %6, %c0_i32_1 : i32
    %8 = arith.extui %7 : i1 to i32
    %c0_i32_2 = arith.constant 0 : i32
    %9 = arith.cmpi ne, %8, %c0_i32_2 : i32
    scf.if %9 {
      %cst = arith.constant 0.000000e+00 : f32
      %10 = vector.broadcast %cst : f32 to vector<16x128xf32>
      %c0 = arith.constant 0 : index
      %c0_3 = arith.constant 0 : index
      %11 = vector.load %arg6[%c0, %c0_3] : memref<16x128xf32, #tpu.memory_space<vmem>>, vector<16x128xf32>
      tpu.vector_store %arg6[%c0, %c0_3], %10 {strides = array<i32>} : memref<16x128xf32, #tpu.memory_space<vmem>>, vector<16x128xf32>,
    } else {
    }
    return
  }
  func.func @transform_0(%arg0: i32, %arg1: memref<1xi32, #tpu.memory_space<smem>>) -> (i32, i32) {
    %0 = arith.index_cast %arg0 : i32 to index
    %1 = memref.load %arg1[%0] : memref<1xi32, #tpu.memory_space<smem>>
    %2 = arith.muli %1, %arg0 : i32
    %c0_i32 = arith.constant 0 : i32
    %c0_i32_0 = arith.constant 0 : i32
    return %2, %c0_i32 : i32, i32
  }
  func.func @transform_1(%arg0: i32, %arg1: memref<1xi32, #tpu.memory_space<smem>>) -> (i32, i32) {
    %c0_i32 = arith.constant 0 : i32
    %c0_i32_0 = arith.constant 0 : i32
    %c0_i32_1 = arith.constant 0 : i32
    return %c0_i32, %c0_i32_0 : i32, i32
  }
  func.func @transform_2(%arg0: i32, %arg1: memref<1xi32, #tpu.memory_space<smem>>) -> (i32, i32) {
    %c0_i32 = arith.constant 0 : i32
    %c0_i32_0 = arith.constant 0 : i32
    %c0_i32_1 = arith.constant 0 : i32
    return %c0_i32, %c0_i32_0 : i32, i32
  }
  func.func @transform_3(%arg0: i32, %arg1: memref<1xi32, #tpu.memory_space<smem>>) -> (i32, i32) {
    %0 = arith.index_cast %arg0 : i32 to index
    %1 = memref.load %arg1[%0] : memref<1xi32, #tpu.memory_space<smem>>
    %2 = arith.muli %1, %arg0 : i32
    %c0_i32 = arith.constant 0 : i32
    %c0_i32_0 = arith.constant 0 : i32
    return %2, %c0_i32 : i32, i32
  }
  func.func @transform_4(%arg0: i32, %arg1: memref<1xi32, #tpu.memory_space<smem>>) -> (i32, i32) {
    %c0_i32 = arith.constant 0 : i32
    %c0_i32_0 = arith.constant 0 : i32
    return %arg0, %c0_i32 : i32, i32
  }
}

</mosaic_0001>

<llo_original>
// kernel: ne.0
$region0: #{ne.0}
  #allocation0 [shape = 's32[1]{0}', space=sflag, size = 0x4, scoped, tag = 'scoped memory for ne.0']
  %s0 = inlined_call_operand.<no memory space> [shape: s32[], index: 0, kind: input, shape index: {}]
  %s1 = inlined_call_operand.vmem [shape: s32[5], index: 1, kind: output, shape index: {}]
  %v2 = vstv %s0
  %3 = vst [vmem:[%s1] sm:$0x1] %v2

// kernel: content_reconstruction_fc.1
$region0: #{content_reconstruction_fc.1}
  #allocation0 [shape = 'u32[]', space=smem, size = 0x4, offset = 0x4, fixed_abs, tag = 'smem constant byte address 0x4 - core index']
  #allocation1 [shape = 'u32[144,128]{1,0:T(1,128)}', space=vmem, size = 0x12000, scoped, tag = 'internal scratch']
  #allocation2 [shape = 's32[1]{0}', space=sflag, size = 0x4, scoped, tag = 'scoped memory for content_reconstruction_fc.1']
  #allocation3 [shape = 's32[1]{0:T(128)S(6)}', space=smem, size = 0x200, scoped, tag = 'prefetched SMEM operand 0']
  %s0 = inlined_call_operand.<no memory space> [shape: s32[1], index: 0, kind: input, shape index: {}]
  %s1 = inlined_call_operand.vmem [shape: bf16[16,128], index: 1, kind: input, shape index: {}]
  %s2 = inlined_call_operand.vmem [shape: bf16[128,128], index: 2, kind: input, shape index: {}]
  %s3 = inlined_call_operand.vmem [shape: f32[1,128], index: 3, kind: input, shape index: {}]
  %s4 = inlined_call_operand.vmem [shape: f32[16,1], index: 4, kind: input, shape index: {}]
  %s5 = inlined_call_operand.vmem [shape: f32[16,128], index: 5, kind: output, shape index: {}]
  %s6 = sld [smem:[#allocation0]]
  $region34: #{content_reconstruction_fc.1} parent=0
    _
  %s8 = ssub.s32 1, %s6
  %s9 = scalar_select 0, %s8, %s6
  %10 = sst [smem:[#allocation3]] %s0
  // Predicated region
  $region2: #{content_reconstruction_fc.1} parent=0 // pred_check
    _
  $region3: #{content_reconstruction_fc.1} parent=0 // pred_check_branch
    %12 = sbr.rel (0) target = $region5
  $region4: #{content_reconstruction_fc.1} parent=0 // pred_region
    %s13 = sld [smem:[#allocation3]]
    %s14 = smul.u32 %s13, 0
    %s15 = smul.u32 2, %s14
    %p16 = scmp.lt.s32.totalorder %s15, 1
    %s17 = scalar_select %p16, %s15, 1
    %s18 = smul.addr %s17, 4
    %s19 = scalar_lea.vmem %s1, %s18
    %s20 = sld [smem:[#allocation3]]
    %s21 = smul.u32 %s20, 0
    %s22 = smul.u32 2, %s21
  $region5: #{content_reconstruction_fc.1} parent=0 // pred_fallthru
    _
  // Predicated region
  $region6: #{content_reconstruction_fc.1} parent=0 // pred_check
    _
  $region7: #{content_reconstruction_fc.1} parent=0 // pred_check_branch
    %24 = sbr.rel (0) target = $region9
  $region8: #{content_reconstruction_fc.1} parent=0 // pred_region
    _
  $region9: #{content_reconstruction_fc.1} parent=0 // pred_fallthru
    _
  // Predicated region
  $region10: #{content_reconstruction_fc.1} parent=0 // pred_check
    _
  $region11: #{content_reconstruction_fc.1} parent=0 // pred_check_branch
    %26 = sbr.rel (0) target = $region13
  $region12: #{content_reconstruction_fc.1} parent=0 // pred_region
    _
  $region13: #{content_reconstruction_fc.1} parent=0 // pred_fallthru
    _
  // Predicated region
  $region14: #{content_reconstruction_fc.1} parent=0 // pred_check
    _
  $region15: #{content_reconstruction_fc.1} parent=0 // pred_check_branch
    %28 = sbr.rel (0) target = $region17
  $region16: #{content_reconstruction_fc.1} parent=0 // pred_region
    %s29 = sld [smem:[#allocation3]]
    %s30 = smul.u32 %s29, 0
    %s31 = smul.u32 2, %s30
    %p32 = scmp.lt.s32.totalorder %s31, 1
    %s33 = scalar_select %p32, %s31, 1
    %s34 = smul.addr %s33, 8
    %s35 = scalar_lea.vmem %s4, %s34
    %s36 = sld [smem:[#allocation3]]
    %s37 = smul.u32 %s36, 0
    %s38 = smul.u32 2, %s37
  $region17: #{content_reconstruction_fc.1} parent=0 // pred_fallthru
    _
  %s39 = sld [smem:[#allocation3]]
  %s40 = smul.u32 %s39, 0
  %s41 = smul.u32 2, %s40
  %p42 = scmp.lt.s32.totalorder %s41, 1
  %s43 = scalar_select %p42, %s41, 1
  %s44 = smul.addr %s43, 4
  %s45 = scalar_lea.vmem %s1, %s44
  %s46 = sld [smem:[#allocation3]]
  %s47 = smul.u32 %s46, 0
  %s48 = smul.u32 2, %s47
  %p49 = scmp.lt.s32.totalorder %s48, 1
  %s50 = scalar_select %p49, %s48, 1
  %s51 = smul.addr %s50, 8
  %s52 = scalar_lea.vmem %s4, %s51
  %s53 = sld [smem:[#allocation3]]
  %s54 = smul.u32 %s53, 0
  %s55 = smul.u32 2, %s54
  %p56 = scmp.lt.s32.totalorder %s55, 1
  %s57 = scalar_select %p56, %s55, 1
  %s58 = smul.addr %s57, 4
  %s59 = scalar_lea.vmem %s1, %s58
  %s60 = sld [smem:[#allocation3]]
  %s61 = smul.u32 %s60, 0
  %s62 = smul.u32 2, %s61
  %s63 = sld [smem:[#allocation3]]
  %s64 = smul.u32 %s63, 0
  %s65 = smul.u32 2, %s64
  %p66 = scmp.lt.s32.totalorder %s65, 1
  %s67 = scalar_select %p66, %s65, 1
  %s68 = smul.addr %s67, 8
  %s69 = scalar_lea.vmem %s4, %s68
  %s70 = sld [smem:[#allocation3]]
  %s71 = smul.u32 %s70, 0
  %s72 = smul.u32 2, %s71
  %s74 = sld [smem:[#allocation3]]
  %p75 = scmp.ne.s32.totalorder %s74, 0
  // Predicated region
  $region18: #{content_reconstruction_fc.1} parent=0 // pred_check
    %p76 = pneg %p75
  $region19: #{content_reconstruction_fc.1} parent=0 // pred_check_branch
    %78 = sbr.rel (%p76) target = $region21
  $region20: #{content_reconstruction_fc.1} parent=0 // pred_region
    %v79 = vld [vmem:[%s59] sm:$0xf]
    %v80 = vld [vmem:[%s59 + $0x4] sm:$0xf]
    %v81 = vld [vmem:[%s2] sm:$0xf]
    %v82 = vld [vmem:[%s2 + $0x4] sm:$0xf]
    %v83 = vld [vmem:[%s2 + $0x8] sm:$0xf]
    %v84 = vld [vmem:[%s2 + $0xc] sm:$0xf]
    %v85 = vld [vmem:[%s2 + $0x10] sm:$0xf]
    %v86 = vld [vmem:[%s2 + $0x14] sm:$0xf]
    %v87 = vld [vmem:[%s2 + $0x18] sm:$0xf]
    %v88 = vld [vmem:[%s2 + $0x1c] sm:$0xf]
    %v89 = vld [vmem:[%s2 + $0x20] sm:$0xf]
    %v90 = vld [vmem:[%s2 + $0x24] sm:$0xf]
    %v91 = vld [vmem:[%s2 + $0x28] sm:$0xf]
    %v92 = vld [vmem:[%s2 + $0x2c] sm:$0xf]
    %v93 = vld [vmem:[%s2 + $0x30] sm:$0xf]
    %v94 = vld [vmem:[%s2 + $0x34] sm:$0xf]
    %v95 = vld [vmem:[%s2 + $0x38] sm:$0xf]
    %v96 = vld [vmem:[%s2 + $0x3c] sm:$0xf]
    %v97 = vld [vmem:[%s3] sm:$0x1]
    %v99 = vlaneseq
    %v100 = vshrl.u32 %v99, 7
    %v101 = vsub.s32 0, %v100
    %v102 = vrot.slane %v97, %v101
    %v106 = vunpack.c.l.b16 %v79
    %v107 = vunpack.c.l.b16 %v80
    %v108 = vpack.c.b16 %v107, %v106
    %v126 = vunpack.c.l.b16 %v81
    %v127 = vunpack.c.l.b16 %v82
    %v128 = vunpack.c.l.b16 %v83
    %v129 = vunpack.c.l.b16 %v84
    %v130 = vunpack.c.l.b16 %v85
    %v131 = vunpack.c.l.b16 %v86
    %v132 = vunpack.c.l.b16 %v87
    %v133 = vunpack.c.l.b16 %v88
    %v134 = vunpack.c.l.b16 %v89
    %v135 = vunpack.c.l.b16 %v90
    %v136 = vunpack.c.l.b16 %v91
    %v137 = vunpack.c.l.b16 %v92
    %v138 = vunpack.c.l.b16 %v93
    %v139 = vunpack.c.l.b16 %v94
    %v140 = vunpack.c.l.b16 %v95
    %v141 = vunpack.c.l.b16 %v96
    %v142 = vpack.c.b16 %v127, %v126
    %v143 = vpack.c.b16 %v129, %v128
    %v144 = vpack.c.b16 %v131, %v130
    %v145 = vpack.c.b16 %v133, %v132
    %v146 = vpack.c.b16 %v135, %v134
    %v147 = vpack.c.b16 %v137, %v136
    %v148 = vpack.c.b16 %v139, %v138
    %v149 = vpack.c.b16 %v141, %v140
    %158 = vmatprep.subr.bf16.mxu0 0
    %159 = vmatpush1.bf16.msra.mxu0 %v142
    %160 = vmatprep.subr.bf16.mxu0 0
    %161 = vmatpush1.bf16.msra.mxu0 %v143
    %162 = vmatprep.subr.bf16.mxu0 0
    %163 = vmatpush1.bf16.msra.mxu0 %v144
    %164 = vmatprep.subr.bf16.mxu0 0
    %165 = vmatpush1.bf16.msra.mxu0 %v145
    %166 = vmatprep.subr.bf16.mxu0 0
    %167 = vmatpush1.bf16.msra.mxu0 %v146
    %168 = vmatprep.subr.bf16.mxu0 0
    %169 = vmatpush1.bf16.msra.mxu0 %v147
    %170 = vmatprep.subr.bf16.mxu0 0
    %171 = vmatpush1.bf16.msra.mxu0 %v148
    %172 = vmatprep.subr.bf16.mxu0 0
    %173 = vmatpush1.bf16.msra.mxu0 %v149
    %174 = vmatprep.subr.bf16.mxu0 0
    %175 = vmatpush1.bf16.msra.mxu0 0
    %176 = vmatprep.subr.bf16.mxu0 0
    %177 = vmatpush1.bf16.msra.mxu0 0
    %178 = vmatprep.subr.bf16.mxu0 0
    %179 = vmatpush1.bf16.msra.mxu0 0
    %180 = vmatprep.subr.bf16.mxu0 0
    %181 = vmatpush1.bf16.msra.mxu0 0
    %182 = vmatprep.subr.bf16.mxu0 0
    %183 = vmatpush1.bf16.msra.mxu0 0
    %184 = vmatprep.subr.bf16.mxu0 0
    %185 = vmatpush1.bf16.msra.mxu0 0
    %186 = vmatprep.subr.bf16.mxu0 0
    %187 = vmatpush1.bf16.msra.mxu0 0
    %188 = vmatprep.subr.bf16.mxu0 0
    %189 = vmatpush1.bf16.msra.mxu0 0
    %190 = vmatprep.mubr.bf16.mxu0 0
    %191 = vmatmul.mubr.bf16.gmra.mrb[0].mxu0 %v108
    %v192 = vpop.f32.mrb[0].mxu0
    %v193 = vadd.f32 %v102, %v192
    %v194 = vpop.f32.mrb[0].mxu0
    %v195 = vpop.f32.mrb[0].mxu0
    %v196 = vadd.f32 %v102, %v195
    %v197 = vpop.f32.mrb[0].mxu0
    %198 = vdwg.mxu0
    %vm199 = vcmp.ge.f32.partialorder %v193, 0.0
    %vm200 = vcmp.ge.f32.partialorder %v196, 0.0
    %v201 = vmul.f32 %v193, 0.01
    %v202 = vmul.f32 %v196, 0.01
    %v203 = vsel %vm199, %v193, %v201
    %v204 = vsel %vm200, %v196, %v202
    %v205 = vld [vmem:[%s69] sm:$0xff]
    %v206 = vld [vmem:[%s69 + $0x8] sm:$0xff]
    %208 = vset.pattern.permute.xlu0 0
    %209 = vperm.xlu0 %208, %v205
    %v210 = vpop.permute.xlu0 %209
    %213 = vset.pattern.permute.xlu0 0
    %214 = vperm.xlu0 %213, %v206
    %v215 = vpop.permute.xlu0 %214
    %v217 = vmul.f32 %v203, %v210
    %v218 = vmul.f32 %v204, %v215
    %219 = vst [vmem:[%s5] sm:$0xff] %v217
    %220 = vst [vmem:[%s5 + $0x8] sm:$0xff] %v218
  $region21: #{content_reconstruction_fc.1} parent=0 // pred_fallthru
    _
  %s221 = sld [smem:[#allocation3]]
  %p222 = scmp.eq.s32.totalorder %s221, 0
  // Predicated region
  $region22: #{content_reconstruction_fc.1} parent=0 // pred_check
    %p223 = pneg %p222
  $region23: #{content_reconstruction_fc.1} parent=0 // pred_check_branch
    %225 = sbr.rel (%p223) target = $region25
  $region24: #{content_reconstruction_fc.1} parent=0 // pred_region
    %226 = vst [vmem:[%s5] sm:$0xff] 0.0
    %227 = vst [vmem:[%s5 + $0x8] sm:$0xff] 0.0
  $region25: #{content_reconstruction_fc.1} parent=0 // pred_fallthru
    _
  // Predicated region
  $region26: #{content_reconstruction_fc.1} parent=0 // pred_check
    _
  $region27: #{content_reconstruction_fc.1} parent=0 // pred_check_branch
    %229 = sbr.rel (0) target = $region29
  $region28: #{content_reconstruction_fc.1} parent=0 // pred_region
    _
  $region29: #{content_reconstruction_fc.1} parent=0 // pred_fallthru
    _
  // Predicated region
  $region30: #{content_reconstruction_fc.1} parent=0 // pred_check
    _
  $region31: #{content_reconstruction_fc.1} parent=0 // pred_check_branch
    %231 = sbr.rel (0) target = $region33
  $region32: #{content_reconstruction_fc.1} parent=0 // pred_region
    _
  $region33: #{content_reconstruction_fc.1} parent=0 // pred_fallthru
    _

</llo_original>
